<compile_context>
chip_gen: v5e
topology: v5e:2x2
jax: 0.10.0
libtpu: 0.0.40
codegen_flags: <defaults>
</compile_context>

<pallas_src>
import numpy as np
import jax
import jax.numpy as jnp
from jax.experimental import pallas as pl
from jax.experimental.pallas import tpu as pltpu


def _make_detection_kernel(nG, tile_s):
    """Build the kernel body with nG / tile_s baked in as Python constants."""
    inv_nG = 1.0 / float(nG)
    nG_f = float(nG)

    def kernel(cparams_ref, pred_ref, out_ref):
        # cparams_ref : (1, C, 4)  -> per-channel [scale, is_x, is_y, sgn]
        # pred_ref / out_ref : (TB, C, TILE_S)
        cp = cparams_ref[...]
        scale = cp[:, :, 0:1]          # (1, C, 1): stride | anchor_px | 1
        is_x = cp[:, :, 1:2]           # (1, C, 1): 1.0 on x rows
        is_y = cp[:, :, 2:3]           # (1, C, 1): 1.0 on y rows
        sgn = cp[:, :, 3:4]            # (1, C, 1): +1 on w/h rows, -1 otherwise
        is_wh = sgn > 0.0

        p = pred_ref[...].astype(jnp.float32)
        ts = p.shape[-1]

        # Lane-only (1, 1, TS) grid coordinates, offset by this tile's global
        # start.  Float floor (+0.5 margin) is exact for realistic grid sizes
        # and avoids vector integer div/mod.
        s0 = pl.program_id(1) * tile_s
        sp = (jax.lax.broadcasted_iota(jnp.int32, (1, 1, ts), 2) + s0
              ).astype(jnp.float32)
        gy = jnp.floor((sp + 0.5) * inv_nG)   # row index
        gx = sp - nG_f * gy                   # column index

        # (1, C, TS) additive grid offsets: two broadcasting muls + one add.
        offset = is_x * gx + is_y * gy

        # Single full-tile exp (sign trick): e = exp(+p) on w/h rows (what the
        # box decode needs) and exp(-p) elsewhere, so sigmoid = 1/(1+e).
        e = jnp.exp(p * sgn)
        base = jnp.where(is_wh, e, 1.0 / (1.0 + e))

        # scale = stride (x/y rows) | anchor_px (w/h rows) | 1 (conf/cls rows)
        out_ref[...] = ((base + offset) * scale).astype(out_ref.dtype)

    return kernel


def detection_layer_forward(x, anchors, num_classes, img_dim, *,
                            layout="torch", out_dtype=jnp.float32):
    """Inference forward pass of DetectionLayer.

    x: (nB, nA*(5+num_classes), nG, nG)  float32 or bfloat16 (NCHW)
    layout="torch":      returns (nB, nA*nG*nG, 5+num_classes)  (PyTorch layout)
    layout="lane_dense": returns (nB, C, nG*nG)  (preferred: skips an extra
                         HBM pass for the attrs-minor transpose)
    """
    nB, C, nG, nG2 = x.shape
    assert nG == nG2
    nA = len(anchors)
    attrs = 5 + num_classes
    assert C == nA * attrs
    S = nG * nG
    stride = float(img_dim) / float(nG)

    # No jnp.pad: reshape only (free), native dtype kept (bf16 OK).
    pred = x.reshape(nB, C, S)

    # Per-channel params [scale, is_x, is_y, sgn] — batch-invariant, DMA'd once.
    anchors_px = np.asarray(anchors, dtype=np.float32)          # (nA, 2) pixels
    cparams = np.zeros((nA, attrs, 4), dtype=np.float32)
    cparams[:, :, 0] = 1.0
    cparams[:, 0, 0] = stride                # x rows
    cparams[:, 1, 0] = stride                # y rows
    cparams[:, 2, 0] = anchors_px[:, 0]      # w rows: anchor width (pixels)
    cparams[:, 3, 0] = anchors_px[:, 1]      # h rows: anchor height (pixels)
    cparams[:, 0, 1] = 1.0                   # is_x
    cparams[:, 1, 2] = 1.0                   # is_y
    cparams[:, :, 3] = -1.0                  # sgn: -1 -> sigmoid path
    cparams[:, 2, 3] = 1.0                   # sgn: +1 -> exp path (w)
    cparams[:, 3, 3] = 1.0                   # sgn: +1 -> exp path (h)
    cparams = jnp.asarray(cparams.reshape(1, C, 4))

    # Tiling: full-S blocks when small (exempt from the 128 rule, no padding);
    # otherwise 2048-lane tiles (masked partial tail).  Fuse batch elements
    # for small grids targeting ~2 MiB f32 blocks, keeping >= 2 grid steps
    # when possible (pipelining + v7x megacore).
    tile_s = S if S <= 2048 else 2048
    n_s = pl.cdiv(S, tile_s)

    per_b_bytes = C * tile_s * 4
    tb = max(1, min(nB, (2 << 20) // max(per_b_bytes, 1)))
    while nB % tb:
        tb -= 1
    while tb > 1 and pl.cdiv(nB, tb) * n_s < 2:
        tb = max(1, tb // 2)
        while nB % tb:
            tb -= 1
    n_b = pl.cdiv(nB, tb)

    kernel = _make_detection_kernel(nG, tile_s)

    in_itemsize = pred.dtype.itemsize
    out_itemsize = jnp.dtype(out_dtype).itemsize
    cost = pl.CostEstimate(
        flops=10 * nB * C * S,
        transcendentals=2 * nB * C * S,
        bytes_accessed=nB * C * S * (in_itemsize + out_itemsize),
    )

    out = pl.pallas_call(
        kernel,
        out_shape=jax.ShapeDtypeStruct((nB, C, S), out_dtype),
        grid=(n_b, n_s),
        in_specs=[
            pl.BlockSpec((1, C, 4), lambda b, s: (0, 0, 0)),        # cparams
            pl.BlockSpec((tb, C, tile_s), lambda b, s: (b, 0, s)),  # predictions
        ],
        out_specs=pl.BlockSpec((tb, C, tile_s), lambda b, s: (b, 0, s)),
        compiler_params=pltpu.CompilerParams(
            dimension_semantics=("parallel", "parallel")),
        cost_estimate=cost,
    )(cparams, pred)

    if layout == "lane_dense":
        return out                                     # (nB, C, S)

    # PyTorch layout (extra HBM pass; avoid in perf-critical pipelines).
    return (out.reshape(nB, nA, attrs, S)
               .transpose(0, 1, 3, 2)
               .reshape(nB, nA * S, attrs))


def _reference_forward(x, anchors, num_classes, img_dim):
    """Pure-JAX reference mirroring the PyTorch forward (targets=None)."""
    nB, C, nG, _ = x.shape
    nA = len(anchors)
    attrs = 5 + num_classes
    stride = float(img_dim) / float(nG)
    pred = x.astype(jnp.float32).reshape(nB, nA, attrs, nG, nG).transpose(0, 1, 3, 4, 2)
    sx = jax.nn.sigmoid(pred[..., 0])
    sy = jax.nn.sigmoid(pred[..., 1])
    w = pred[..., 2]
    h = pred[..., 3]
    conf = jax.nn.sigmoid(pred[..., 4])
    cls = jax.nn.sigmoid(pred[..., 5:])
    grid_x = jnp.tile(jnp.arange(nG, dtype=jnp.float32), (nG, 1)).reshape(1, 1, nG, nG)
    grid_y = jnp.tile(jnp.arange(nG, dtype=jnp.float32), (nG, 1)).T.reshape(1, 1, nG, nG)
    scaled = jnp.asarray(anchors, dtype=jnp.float32) / stride
    aw = scaled[:, 0].reshape(1, nA, 1, 1)
    ah = scaled[:, 1].reshape(1, nA, 1, 1)
    boxes = jnp.stack(
        [sx + grid_x, sy + grid_y, jnp.exp(w) * aw, jnp.exp(h) * ah], axis=-1)
    out = jnp.concatenate(
        [boxes.reshape(nB, -1, 4) * stride,
         conf.reshape(nB, -1, 1),
         cls.reshape(nB, -1, num_classes)], axis=-1)
    return out


if __name__ == "__main__":
    key = jax.random.PRNGKey(0)
    k1, k2 = jax.random.split(key)

    anchors = [(10.0, 13.0), (16.0, 30.0), (33.0, 23.0)]
    num_classes = 4
    nA = len(anchors)
    attrs = 5 + num_classes                  # 9, C = 27

    # Config 1: small 128-aligned spatial grid (batch 2).
    nB, nG, img_dim = 2, 16, 64
    x1 = jax.random.normal(k1, (nB, nA * attrs, nG, nG), dtype=jnp.float32)
    out1 = jax.block_until_ready(
        detection_layer_forward(x1, anchors, num_classes, img_dim))
    ref1 = _reference_forward(x1, anchors, num_classes, img_dim)
    assert out1.shape == (nB, nA * nG * nG, attrs)
    assert jnp.allclose(out1, ref1, atol=1e-4, rtol=1e-4)

    # Lane-dense layout (preferred API: no epilogue transpose / extra HBM pass).
    lane = jax.block_until_ready(
        detection_layer_forward(x1, anchors, num_classes, img_dim,
                                layout="lane_dense"))
    lane_as_torch = (lane.reshape(nB, nA, attrs, nG * nG)
                         .transpose(0, 1, 3, 2).reshape(nB, -1, attrs))
    assert jnp.allclose(lane_as_torch, ref1, atol=1e-4, rtol=1e-4)

    # Config 2: real YOLO grid (S = 169, not 128-aligned -> masked tail, no pad).
    nB2, nG2, img_dim2 = 1, 13, 416
    x2 = jax.random.normal(k2, (nB2, nA * attrs, nG2, nG2), dtype=jnp.float32)
    out2 = jax.block_until_ready(
        detection_layer_forward(x2, anchors, num_classes, img_dim2))
    ref2 = _reference_forward(x2, anchors, num_classes, img_dim2)
    assert out2.shape == (nB2, nA * nG2 * nG2, attrs)
    assert jnp.allclose(out2, ref2, atol=1e-4, rtol=1e-4)

    print("KERNEL_OK")
</pallas_src>

<mosaic_0001>
module attributes {stable_mosaic.version = 11 : i64} {
  func.func @kernel(%arg0: i32, %arg1: i32, %arg2: memref<1x27x4xf32, #tpu.memory_space<vmem>>, %arg3: memref<1x27x256xf32, #tpu.memory_space<vmem>>, %arg4: memref<1x27x256xf32, #tpu.memory_space<vmem>>) attributes {dimension_semantics = [#tpu.dimension_semantics<parallel>, #tpu.dimension_semantics<parallel>], iteration_bounds = array<i64: 2, 1>, scalar_prefetch = 0 : i64, scratch_operands = 0 : i64, tpu.core_type = #tpu.core_type<tc>, window_params = [{pipeline_mode = #tpu.pipeline_mode<synchronous>, transform_indices = @transform_0, window_bounds = array<i64: 1, 27, 4>}, {transform_indices = @transform_1, window_bounds = array<i64: 1, 27, 256>}, {transform_indices = @transform_2, window_bounds = array<i64: 1, 27, 256>}]} {
    %c0 = arith.constant 0 : index
    %c0_0 = arith.constant 0 : index
    %c0_1 = arith.constant 0 : index
    %0 = vector.load %arg2[%c0, %c0_0, %c0_1] : memref<1x27x4xf32, #tpu.memory_space<vmem>>, vector<1x27x4xf32>
    %1 = vector.extract_strided_slice %0 {offsets = [0, 0, 0], sizes = [1, 27, 1], strides = [1, 1, 1]} : vector<1x27x4xf32> to vector<1x27x1xf32>
    %2 = vector.extract_strided_slice %0 {offsets = [0, 0, 1], sizes = [1, 27, 1], strides = [1, 1, 1]} : vector<1x27x4xf32> to vector<1x27x1xf32>
    %3 = vector.extract_strided_slice %0 {offsets = [0, 0, 2], sizes = [1, 27, 1], strides = [1, 1, 1]} : vector<1x27x4xf32> to vector<1x27x1xf32>
    %4 = vector.extract_strided_slice %0 {offsets = [0, 0, 3], sizes = [1, 27, 1], strides = [1, 1, 1]} : vector<1x27x4xf32> to vector<1x27x1xf32>
    %cst = arith.constant 0.000000e+00 : f32
    %5 = vector.broadcast %cst : f32 to vector<1x27x1xf32>
    %6 = arith.cmpf ogt, %4, %5 : vector<1x27x1xf32>
    %c0_2 = arith.constant 0 : index
    %c0_3 = arith.constant 0 : index
    %c0_4 = arith.constant 0 : index
    %7 = vector.load %arg3[%c0_2, %c0_3, %c0_4] : memref<1x27x256xf32, #tpu.memory_space<vmem>>, vector<1x27x256xf32>
    %c256_i32 = arith.constant 256 : i32
    %8 = arith.muli %arg1, %c256_i32 : i32
    %9 = tpu.iota {dimensions = array<i32: 2>} : vector<1x1x256xi32>
    %10 = vector.broadcast %8 : i32 to vector<1x1x256xi32>
    %11 = arith.addi %9, %10 : vector<1x1x256xi32>
    %12 = arith.sitofp %11 : vector<1x1x256xi32> to vector<1x1x256xf32>
    %cst_5 = arith.constant 5.000000e-01 : f32
    %13 = vector.broadcast %cst_5 : f32 to vector<1x1x256xf32>
    %14 = arith.addf %12, %13 : vector<1x1x256xf32>
    %cst_6 = arith.constant 6.250000e-02 : f32
    %15 = vector.broadcast %cst_6 : f32 to vector<1x1x256xf32>
    %16 = arith.mulf %14, %15 : vector<1x1x256xf32>
    %17 = math.floor %16 : vector<1x1x256xf32>
    %cst_7 = arith.constant 1.600000e+01 : f32
    %18 = vector.broadcast %cst_7 : f32 to vector<1x1x256xf32>
    %19 = arith.mulf %18, %17 : vector<1x1x256xf32>
    %20 = arith.subf %12, %19 : vector<1x1x256xf32>
    %21 = vector.broadcast %2 : vector<1x27x1xf32> to vector<1x27x256xf32>
    %22 = vector.broadcast %20 : vector<1x1x256xf32> to vector<1x27x256xf32>
    %23 = arith.mulf %21, %22 : vector<1x27x256xf32>
    %24 = vector.broadcast %3 : vector<1x27x1xf32> to vector<1x27x256xf32>
    %25 = vector.broadcast %17 : vector<1x1x256xf32> to vector<1x27x256xf32>
    %26 = arith.mulf %24, %25 : vector<1x27x256xf32>
    %27 = arith.addf %23, %26 : vector<1x27x256xf32>
    %28 = vector.broadcast %4 : vector<1x27x1xf32> to vector<1x27x256xf32>
    %29 = arith.mulf %7, %28 : vector<1x27x256xf32>
    %30 = math.exp %29 : vector<1x27x256xf32>
    %cst_8 = arith.constant 1.000000e+00 : f32
    %31 = vector.broadcast %cst_8 : f32 to vector<1x27x256xf32>
    %32 = arith.addf %31, %30 : vector<1x27x256xf32>
    %cst_9 = arith.constant 1.000000e+00 : f32
    %33 = vector.broadcast %cst_9 : f32 to vector<1x27x256xf32>
    %34 = arith.divf %33, %32 : vector<1x27x256xf32>
    %35 = vector.shape_cast %6 : vector<1x27x1xi1> to vector<1x27x1xi1>
    %36 = vector.broadcast %35 : vector<1x27x1xi1> to vector<1x27x256xi1>
    %37 = arith.select %36, %30, %34 : vector<1x27x256xi1>, vector<1x27x256xf32>
    %38 = arith.addf %37, %27 : vector<1x27x256xf32>
    %39 = vector.broadcast %1 : vector<1x27x1xf32> to vector<1x27x256xf32>
    %40 = arith.mulf %38, %39 : vector<1x27x256xf32>
    %c0_10 = arith.constant 0 : index
    %c0_11 = arith.constant 0 : index
    %c0_12 = arith.constant 0 : index
    %41 = vector.load %arg4[%c0_10, %c0_11, %c0_12] : memref<1x27x256xf32, #tpu.memory_space<vmem>>, vector<1x27x256xf32>
    tpu.vector_store %arg4[%c0_10, %c0_11, %c0_12], %40 {strides = array<i32>} : memref<1x27x256xf32, #tpu.memory_space<vmem>>, vector<1x27x256xf32>,
    return
  }
  func.func @transform_0(%arg0: i32, %arg1: i32) -> (i32, i32, i32) {
    %c0_i32 = arith.constant 0 : i32
    %c0_i32_0 = arith.constant 0 : i32
    %c0_i32_1 = arith.constant 0 : i32
    %c0_i32_2 = arith.constant 0 : i32
    return %c0_i32, %c0_i32_0, %c0_i32_1 : i32, i32, i32
  }
  func.func @transform_1(%arg0: i32, %arg1: i32) -> (i32, i32, i32) {
    %c0_i32 = arith.constant 0 : i32
    %c0_i32_0 = arith.constant 0 : i32
    return %arg0, %c0_i32, %arg1 : i32, i32, i32
  }
  func.func @transform_2(%arg0: i32, %arg1: i32) -> (i32, i32, i32) {
    %c0_i32 = arith.constant 0 : i32
    %c0_i32_0 = arith.constant 0 : i32
    return %arg0, %c0_i32, %arg1 : i32, i32, i32
  }
}

</mosaic_0001>

<llo_original>
// kernel: tpu_custom_call.1
$region0: #{tpu_custom_call.1}
  #allocation0 [shape = 'u32[]', space=smem, size = 0x4, offset = 0x4, fixed_abs, tag = 'smem constant byte address 0x4 - core index']
  #allocation1 [shape = 'u32[72,128]{1,0:T(1,128)}', space=vmem, size = 0x9000, scoped, tag = 'internal scratch']
  %s0 = inlined_call_operand.vmem [shape: f32[1,27,4], index: 0, kind: input, shape index: {}]
  %s1 = inlined_call_operand.vmem [shape: f32[2,27,256], index: 1, kind: input, shape index: {}]
  %s2 = inlined_call_operand.vmem [shape: f32[2,27,256], index: 2, kind: output, shape index: {}]
  %s3 = sld [smem:[#allocation0]]
  $region41: #{tpu_custom_call.1} parent=0
    _
  %s5 = ssub.s32 1, %s3
  %s6 = scalar_select 0, %s5, %s3
  loop: start=0, step=1, limit=4
  $region2: #{tpu_custom_call.1} parent=0 // loop_pre_header
    _
  $region3: #{tpu_custom_call.1} parent=0 // loop_header
    %s8 = sphi 0, %s12
    %p9 = scmp.ge.s32.totalorder %s8, 4
    %s15 = sphi 0, %s27
    %s16 = sphi 0, %s23
    %s17 = sphi 0, %s15
    %s18 = sphi 0, %s16
    %s19 = sphi 0, %s17
    %s20 = sphi 0, %s18
    %s28 = sphi 0, %s28
    %s30 = sphi 0, %s28
    %s31 = sphi 0, %s30
    %s45 = sphi 0, %s31
    %s53 = sphi 0, %s55
    %s56 = sphi 0, %s53
    %s57 = sphi 0, %s56
    %s73 = sphi 0, %s57
    %s81 = sphi 0, %s83
    %s84 = sphi 0, %s81
    %s85 = sphi 0, %s84
    %s101 = sphi 0, %s85
  $region4: #{tpu_custom_call.1} parent=0 // loop_header_branch
    %11 = sbr.rel (%p9) target = $region8
  $region5: #{tpu_custom_call.1} parent=0 // loop_body
    %s13 = ssub.s32 %s8, 1
    %s14 = ssub.s32 %s8, 2
    %s21 = sadd.s32 1, %s16
    %p22 = scmp.ge.s32.totalorder %s21, 1
    %s23 = scalar_select %p22, 0, %s21
    %s24 = sadd.s32 1, %s15
    %s25 = scalar_select %p22, %s24, %s15
    %p26 = scmp.ge.s32.totalorder %s25, 2
    %s27 = scalar_select %p26, 0, %s25
    %s29 = sadd.s32 %s28, 1
    %p32 = scmp.eq.s32.totalorder %s8, 1
    %p33 = scmp.ne.s32.totalorder %s28, %s30
    %p34 = scmp.eq.s32.totalorder %s8, 0
    %p35 = por %p33, %p34
    %p36 = scmp.ne.s32.totalorder %s28, %s30
    %p37 = scmp.eq.s32.totalorder %s13, 1
    %p38 = por %p36, %p37
    %p39 = scmp.ne.s32.totalorder %s30, %s31
    %p40 = scmp.eq.s32.totalorder %s13, 0
    %p41 = por %p39, %p40
    %p42 = scmp.ne.s32.totalorder %s30, %s31
    %p43 = scmp.eq.s32.totalorder %s14, 1
    %p44 = por %p42, %p43
    %p46 = scmp.ne.s32.totalorder %s31, %s45
    %p47 = scmp.eq.s32.totalorder %s14, 0
    %p48 = por %p46, %p47
    %s49 = ssub.s32 %s15, %s27
    %s50 = ssub.s32 %s16, %s23
    %s51 = sor.u32 %s49, %s50
    %p52 = scmp.eq.s32.totalorder %s51, 0
    %s54 = sadd.s32 %s53, 1
    %s55 = scalar_select %p52, %s53, %s54
    %p58 = pneg %p52
    %p59 = scmp.eq.s32.totalorder %s8, 1
    %p60 = por %p58, %p59
    %p61 = scmp.ne.s32.totalorder %s53, %s56
    %p62 = scmp.eq.s32.totalorder %s8, 0
    %p63 = por %p61, %p62
    %p64 = scmp.ne.s32.totalorder %s53, %s56
    %p65 = scmp.eq.s32.totalorder %s13, 1
    %p66 = por %p64, %p65
    %p67 = scmp.ne.s32.totalorder %s56, %s57
    %p68 = scmp.eq.s32.totalorder %s13, 0
    %p69 = por %p67, %p68
    %p70 = scmp.ne.s32.totalorder %s56, %s57
    %p71 = scmp.eq.s32.totalorder %s14, 1
    %p72 = por %p70, %p71
    %p74 = scmp.ne.s32.totalorder %s57, %s73
    %p75 = scmp.eq.s32.totalorder %s14, 0
    %p76 = por %p74, %p75
    %s77 = ssub.s32 %s15, %s27
    %s78 = ssub.s32 %s16, %s23
    %s79 = sor.u32 %s77, %s78
    %p80 = scmp.eq.s32.totalorder %s79, 0
    %s82 = sadd.s32 %s81, 1
    %s83 = scalar_select %p80, %s81, %s82
    %p86 = pneg %p80
    %p87 = scmp.eq.s32.totalorder %s8, 1
    %p88 = por %p86, %p87
    %p89 = scmp.ne.s32.totalorder %s81, %s84
    %p90 = scmp.eq.s32.totalorder %s8, 0
    %p91 = por %p89, %p90
    %p92 = scmp.ne.s32.totalorder %s81, %s84
    %p93 = scmp.eq.s32.totalorder %s13, 1
    %p94 = por %p92, %p93
    %p95 = scmp.ne.s32.totalorder %s84, %s85
    %p96 = scmp.eq.s32.totalorder %s13, 0
    %p97 = por %p95, %p96
    %p98 = scmp.ne.s32.totalorder %s84, %s85
    %p99 = scmp.eq.s32.totalorder %s14, 1
    %p100 = por %p98, %p99
    %p102 = scmp.ne.s32.totalorder %s85, %s101
    %p103 = scmp.eq.s32.totalorder %s14, 0
    %p104 = por %p102, %p103
    %p105 = scmp.le.s32.totalorder 1, %s8
    %p106 = scmp.lt.s32.totalorder %s8, 3
    %p107 = pnand %p105, %p106
    %p108 = pneg %p107
    // Predicated region
    $region9: #{tpu_custom_call.1} parent=5 // pred_check
      _
    $region10: #{tpu_custom_call.1} parent=5 // pred_check_branch
      %110 = sbr.rel (%p107) target = $region12
    $region11: #{tpu_custom_call.1} parent=5 // pred_region
      %s111 = ssub.s32 %s8, 1
      // Predicated region
      $region13: #{tpu_custom_call.1} parent=11 // pred_check
        %p112 = pneg %p41
      $region14: #{tpu_custom_call.1} parent=11 // pred_check_branch
        %114 = sbr.rel (%p112) target = $region16
      $region15: #{tpu_custom_call.1} parent=11 // pred_region
        _
      $region16: #{tpu_custom_call.1} parent=11 // pred_fallthru
        _
    $region12: #{tpu_custom_call.1} parent=5 // pred_fallthru
      _
    %p115 = scmp.lt.s32.totalorder %s8, 2
    // Predicated region
    $region17: #{tpu_custom_call.1} parent=5 // pred_check
      %p116 = pneg %p115
    $region18: #{tpu_custom_call.1} parent=5 // pred_check_branch
      %118 = sbr.rel (%p116) target = $region20
    $region19: #{tpu_custom_call.1} parent=5 // pred_region
      // Predicated region
      $region21: #{tpu_custom_call.1} parent=19 // pred_check
        %p119 = pneg %p63
      $region22: #{tpu_custom_call.1} parent=19 // pred_check_branch
        %121 = sbr.rel (%p119) target = $region24
      $region23: #{tpu_custom_call.1} parent=19 // pred_region
        %s122 = smul.u32 2, %s16
        %p123 = scmp.lt.s32.totalorder %s15, 1
        %s124 = scalar_select %p123, %s15, 1
        %p125 = scmp.lt.s32.totalorder %s122, 1
        %s126 = scalar_select %p125, %s122, 1
        %s127 = smul.addr %s124, 8
        %s128 = sadd.s32 %s126, %s127
        %s129 = smul.addr %s128, 8
        %s130 = scalar_lea.vmem %s1, %s129
        %s131 = smul.u32 2, %s16
      $region24: #{tpu_custom_call.1} parent=19 // pred_fallthru
        _
    $region20: #{tpu_custom_call.1} parent=5 // pred_fallthru
      _
    %p132 = scmp.le.s32.totalorder 1, %s8
    %p133 = scmp.lt.s32.totalorder %s8, 3
    %p134 = pnand %p132, %p133
    %p135 = pneg %p134
    // Predicated region
    $region25: #{tpu_custom_call.1} parent=5 // pred_check
      _
    $region26: #{tpu_custom_call.1} parent=5 // pred_check_branch
      %137 = sbr.rel (%p134) target = $region28
    $region27: #{tpu_custom_call.1} parent=5 // pred_region
      %s138 = ssub.s32 %s8, 1
      %p139 = pneg %p41
      %p140 = pneg %p38
      %s141 = smul.u32 2, %s18
      %p142 = scmp.lt.s32.totalorder %s17, 1
      %s143 = scalar_select %p142, %s17, 1
      %p144 = scmp.lt.s32.totalorder %s141, 1
      %s145 = scalar_select %p144, %s141, 1
      %s146 = smul.addr %s143, 8
      %s147 = sadd.s32 %s145, %s146
      %s148 = smul.addr %s147, 8
      %s149 = scalar_lea.vmem %s1, %s148
      %p150 = pneg %p69
      %p151 = pneg %p66
      %p152 = pneg %p97
      %p153 = pneg %p94
      %s154 = smul.u32 2, %s18
      %p155 = scmp.lt.s32.totalorder %s17, 1
      %s156 = scalar_select %p155, %s17, 1
      %p157 = scmp.lt.s32.totalorder %s154, 1
      %s158 = scalar_select %p157, %s154, 1
      %s159 = smul.addr %s156, 8
      %s160 = sadd.s32 %s158, %s159
      %s161 = smul.addr %s160, 8
      %s162 = scalar_lea.vmem %s2, %s161
      %s163 = smul.u32 2, %s18
      %p164 = scmp.lt.s32.totalorder %s17, 1
      %s165 = scalar_select %p164, %s17, 1
      %p166 = scmp.lt.s32.totalorder %s163, 1
      %s167 = scalar_select %p166, %s163, 1
      %s168 = smul.addr %s165, 8
      %s169 = sadd.s32 %s167, %s168
      %s170 = smul.addr %s169, 8
      %s171 = scalar_lea.vmem %s1, %s170
      %s172 = smul.u32 2, %s18
      %s173 = smul.u32 2, %s18
      %p174 = scmp.lt.s32.totalorder %s17, 1
      %s175 = scalar_select %p174, %s17, 1
      %p176 = scmp.lt.s32.totalorder %s173, 1
      %s177 = scalar_select %p176, %s173, 1
      %s178 = smul.addr %s175, 8
      %s179 = sadd.s32 %s177, %s178
      %s180 = smul.addr %s179, 8
      %s181 = scalar_lea.vmem %s2, %s180
      %s182 = smul.u32 2, %s18
      %v183 = vld [vmem:[%s0] sm:$0xff]
      %v184 = vld [vmem:[%s0 + $0x8] sm:$0xff]
      %v185 = vld [vmem:[%s0 + $0x10] sm:$0xff]
      %v186 = vld [vmem:[%s0 + $0x18] sm:$0x7]
      %vm187 = vcmp.gt.f32.partialorder %v183, 0.0
      %vm188 = vcmp.gt.f32.partialorder %v184, 0.0
      %vm189 = vcmp.gt.f32.partialorder %v185, 0.0
      %vm190 = vcmp.gt.f32.partialorder %v186, 0.0
      %v191 = vld [vmem:[%s171] sm:$0xff]
      %v192 = vld [vmem:[%s171 + $0x8] sm:$0xff]
      %v193 = vld [vmem:[%s171 + $0x10] sm:$0xff]
      %v194 = vld [vmem:[%s171 + $0x18] sm:$0xff]
      %v195 = vld [vmem:[%s171 + $0x20] sm:$0xff]
      %v196 = vld [vmem:[%s171 + $0x28] sm:$0xff]
      %v197 = vld [vmem:[%s171 + $0x30] sm:$0x7]
      %v198 = vld [vmem:[%s171 + $0x38] sm:$0x7]
      %s199 = smul.u32 %s18, 256
      %v200 = vlaneseq
      %v201 = vand.u32 %v200, 127
      %v202 = vadd.s32 %v201, 128
      %v203 = vstv %s199
      %v204 = vadd.s32 %v201, %v203
      %v205 = vadd.s32 %v202, %v203
      %v206 = vcvt.s32.f32 %v204
      %v207 = vcvt.s32.f32 %v205
      %v208 = vadd.f32 %v206, 0.5
      %v209 = vadd.f32 %v207, 0.5
      %v210 = vmul.f32 %v208, 0.0625
      %v211 = vmul.f32 %v209, 0.0625
      %v212 = vfloor.f32 %v210
      %v213 = vfloor.f32 %v211
      %v214 = vmul.f32 %v212, 16.0
      %v215 = vmul.f32 %v213, 16.0
      %v216 = vsub.f32 %v206, %v214
      %v217 = vsub.f32 %v207, %v215
      %219 = vset.pattern.permute.xlu0 1
      %220 = vperm.xlu0 %219, %v183
      %v221 = vpop.permute.xlu0 %220
      %224 = vset.pattern.permute.xlu0 1
      %225 = vperm.xlu0 %224, %v184
      %v226 = vpop.permute.xlu0 %225
      %229 = vset.pattern.permute.xlu0 1
      %230 = vperm.xlu0 %229, %v185
      %v231 = vpop.permute.xlu0 %230
      %234 = vset.pattern.permute.xlu0 1
      %235 = vperm.xlu0 %234, %v186
      %v236 = vpop.permute.xlu0 %235
      %v238 = vmul.f32 %v221, %v216
      %v239 = vmul.f32 %v221, %v217
      %v240 = vmul.f32 %v226, %v216
      %v241 = vmul.f32 %v226, %v217
      %v242 = vmul.f32 %v231, %v216
      %v243 = vmul.f32 %v231, %v217
      %v244 = vmul.f32 %v236, %v216
      %v245 = vmul.f32 %v236, %v217
      %246 = vset.pattern.permute.xlu0 2
      %247 = vperm.xlu0 %246, %v183
      %v248 = vpop.permute.xlu0 %247
      %250 = vset.pattern.permute.xlu0 2
      %251 = vperm.xlu0 %250, %v184
      %v252 = vpop.permute.xlu0 %251
      %254 = vset.pattern.permute.xlu0 2
      %255 = vperm.xlu0 %254, %v185
      %v256 = vpop.permute.xlu0 %255
      %258 = vset.pattern.permute.xlu0 2
      %259 = vperm.xlu0 %258, %v186
      %v260 = vpop.permute.xlu0 %259
      %v262 = vmul.f32 %v248, %v212
      %v263 = vmul.f32 %v248, %v213
      %v264 = vmul.f32 %v252, %v212
      %v265 = vmul.f32 %v252, %v213
      %v266 = vmul.f32 %v256, %v212
      %v267 = vmul.f32 %v256, %v213
      %v268 = vmul.f32 %v260, %v212
      %v269 = vmul.f32 %v260, %v213
      %v270 = vadd.f32 %v238, %v262
      %v271 = vadd.f32 %v239, %v263
      %v272 = vadd.f32 %v240, %v264
      %v273 = vadd.f32 %v241, %v265
      %v274 = vadd.f32 %v242, %v266
      %v275 = vadd.f32 %v243, %v267
      %v276 = vadd.f32 %v244, %v268
      %v277 = vadd.f32 %v245, %v269
      %278 = vset.pattern.permute.xlu0 3
      %279 = vperm.xlu0 %278, %v183
      %v280 = vpop.permute.xlu0 %279
      %282 = vset.pattern.permute.xlu0 3
      %283 = vperm.xlu0 %282, %v184
      %v284 = vpop.permute.xlu0 %283
      %286 = vset.pattern.permute.xlu0 3
      %287 = vperm.xlu0 %286, %v185
      %v288 = vpop.permute.xlu0 %287
      %290 = vset.pattern.permute.xlu0 3
      %291 = vperm.xlu0 %290, %v186
      %v292 = vpop.permute.xlu0 %291
      %v294 = vmul.f32 %v191, %v280
      %v295 = vmul.f32 %v192, %v280
      %v296 = vmul.f32 %v193, %v284
      %v297 = vmul.f32 %v194, %v284
      %v298 = vmul.f32 %v195, %v288
      %v299 = vmul.f32 %v196, %v288
      %v300 = vmul.f32 %v197, %v292
      %v301 = vmul.f32 %v198, %v292
      %v302 = vmul.f32 %v294, 1.442695
      %v303 = vpow.pop %v302
      %v304 = vmul.f32 %v295, 1.442695
      %v305 = vpow.pop %v304
      %v306 = vmul.f32 %v296, 1.442695
      %v307 = vpow.pop %v306
      %v308 = vmul.f32 %v297, 1.442695
      %v309 = vpow.pop %v308
      %v310 = vmul.f32 %v298, 1.442695
      %v311 = vpow.pop %v310
      %v312 = vmul.f32 %v299, 1.442695
      %v313 = vpow.pop %v312
      %v314 = vmul.f32 %v300, 1.442695
      %v315 = vpow.pop %v314
      %v316 = vmul.f32 %v301, 1.442695
      %v317 = vpow.pop %v316
      %v318 = vadd.f32 %v303, 1.0
      %v319 = vadd.f32 %v305, 1.0
      %v320 = vadd.f32 %v307, 1.0
      %v321 = vadd.f32 %v309, 1.0
      %v322 = vadd.f32 %v311, 1.0
      %v323 = vadd.f32 %v313, 1.0
      %v324 = vadd.f32 %v315, 1.0
      %v325 = vadd.f32 %v317, 1.0
      %v326 = vrcp.pop %v318
      %v327 = vmul.f32 %v318, %v326
      %v328 = vsub.f32 1.0, %v327
      %v329 = vmul.f32 %v326, %v328
      %v330 = vadd.f32 %v326, %v329
      %vm331 = vweird.f32 %v318
      %vm332 = vweird.f32 %v326
      %vm333 = vmor %vm331, %vm332
      %v334 = vsel %vm333, %v326, %v330
      %v335 = vand.u32 2147483647, %v318
      %vm336 = vcmp.eq.f32.partialorder %v335, 8.507059e+37
      %v337 = vand.u32 %v318, 2147483648
      %v338 = vor.u32 1.1754944e-38, %v337
      %v339 = vsel %vm336, %v338, %v334
      %v340 = vmul.f32 1.0, %v339
      %v341 = vrcp.pop %v319
      %v342 = vmul.f32 %v319, %v341
      %v343 = vsub.f32 1.0, %v342
      %v344 = vmul.f32 %v341, %v343
      %v345 = vadd.f32 %v341, %v344
      %vm346 = vweird.f32 %v319
      %vm347 = vweird.f32 %v341
      %vm348 = vmor %vm346, %vm347
      %v349 = vsel %vm348, %v341, %v345
      %v350 = vand.u32 2147483647, %v319
      %vm351 = vcmp.eq.f32.partialorder %v350, 8.507059e+37
      %v352 = vand.u32 %v319, 2147483648
      %v353 = vor.u32 1.1754944e-38, %v352
      %v354 = vsel %vm351, %v353, %v349
      %v355 = vmul.f32 1.0, %v354
      %v356 = vrcp.pop %v320
      %v357 = vmul.f32 %v320, %v356
      %v358 = vsub.f32 1.0, %v357
      %v359 = vmul.f32 %v356, %v358
      %v360 = vadd.f32 %v356, %v359
      %vm361 = vweird.f32 %v320
      %vm362 = vweird.f32 %v356
      %vm363 = vmor %vm361, %vm362
      %v364 = vsel %vm363, %v356, %v360
      %v365 = vand.u32 2147483647, %v320
      %vm366 = vcmp.eq.f32.partialorder %v365, 8.507059e+37
      %v367 = vand.u32 %v320, 2147483648
      %v368 = vor.u32 1.1754944e-38, %v367
      %v369 = vsel %vm366, %v368, %v364
      %v370 = vmul.f32 1.0, %v369
      %v371 = vrcp.pop %v321
      %v372 = vmul.f32 %v321, %v371
      %v373 = vsub.f32 1.0, %v372
      %v374 = vmul.f32 %v371, %v373
      %v375 = vadd.f32 %v371, %v374
      %vm376 = vweird.f32 %v321
      %vm377 = vweird.f32 %v371
      %vm378 = vmor %vm376, %vm377
      %v379 = vsel %vm378, %v371, %v375
      %v380 = vand.u32 2147483647, %v321
      %vm381 = vcmp.eq.f32.partialorder %v380, 8.507059e+37
      %v382 = vand.u32 %v321, 2147483648
      %v383 = vor.u32 1.1754944e-38, %v382
      %v384 = vsel %vm381, %v383, %v379
      %v385 = vmul.f32 1.0, %v384
      %v386 = vrcp.pop %v322
      %v387 = vmul.f32 %v322, %v386
      %v388 = vsub.f32 1.0, %v387
      %v389 = vmul.f32 %v386, %v388
      %v390 = vadd.f32 %v386, %v389
      %vm391 = vweird.f32 %v322
      %vm392 = vweird.f32 %v386
      %vm393 = vmor %vm391, %vm392
      %v394 = vsel %vm393, %v386, %v390
      %v395 = vand.u32 2147483647, %v322
      %vm396 = vcmp.eq.f32.partialorder %v395, 8.507059e+37
      %v397 = vand.u32 %v322, 2147483648
      %v398 = vor.u32 1.1754944e-38, %v397
      %v399 = vsel %vm396, %v398, %v394
      %v400 = vmul.f32 1.0, %v399
      %v401 = vrcp.pop %v323
      %v402 = vmul.f32 %v323, %v401
      %v403 = vsub.f32 1.0, %v402
      %v404 = vmul.f32 %v401, %v403
      %v405 = vadd.f32 %v401, %v404
      %vm406 = vweird.f32 %v323
      %vm407 = vweird.f32 %v401
      %vm408 = vmor %vm406, %vm407
      %v409 = vsel %vm408, %v401, %v405
      %v410 = vand.u32 2147483647, %v323
      %vm411 = vcmp.eq.f32.partialorder %v410, 8.507059e+37
      %v412 = vand.u32 %v323, 2147483648
      %v413 = vor.u32 1.1754944e-38, %v412
      %v414 = vsel %vm411, %v413, %v409
      %v415 = vmul.f32 1.0, %v414
      %v416 = vrcp.pop %v324
      %v417 = vmul.f32 %v324, %v416
      %v418 = vsub.f32 1.0, %v417
      %v419 = vmul.f32 %v416, %v418
      %v420 = vadd.f32 %v416, %v419
      %vm421 = vweird.f32 %v324
      %vm422 = vweird.f32 %v416
      %vm423 = vmor %vm421, %vm422
      %v424 = vsel %vm423, %v416, %v420
      %v425 = vand.u32 2147483647, %v324
      %vm426 = vcmp.eq.f32.partialorder %v425, 8.507059e+37
      %v427 = vand.u32 %v324, 2147483648
      %v428 = vor.u32 1.1754944e-38, %v427
      %v429 = vsel %vm426, %v428, %v424
      %v430 = vmul.f32 1.0, %v429
      %v431 = vrcp.pop %v325
      %v432 = vmul.f32 %v325, %v431
      %v433 = vsub.f32 1.0, %v432
      %v434 = vmul.f32 %v431, %v433
      %v435 = vadd.f32 %v431, %v434
      %vm436 = vweird.f32 %v325
      %vm437 = vweird.f32 %v431
      %vm438 = vmor %vm436, %vm437
      %v439 = vsel %vm438, %v431, %v435
      %v440 = vand.u32 2147483647, %v325
      %vm441 = vcmp.eq.f32.partialorder %v440, 8.507059e+37
      %v442 = vand.u32 %v325, 2147483648
      %v443 = vor.u32 1.1754944e-38, %v442
      %v444 = vsel %vm441, %v443, %v439
      %v445 = vmul.f32 1.0, %v444
      %v446 = vsel %vm187, 1, 0
      %v447 = vsel %vm188, 1, 0
      %v448 = vsel %vm189, 1, 0
      %v449 = vsel %vm190, 1, 0
      %450 = vset.pattern.permute.xlu0 3
      %451 = vperm.xlu0 %450, %v446
      %v452 = vpop.permute.xlu0 %451
      %453 = vset.pattern.permute.xlu0 3
      %454 = vperm.xlu0 %453, %v447
      %v455 = vpop.permute.xlu0 %454
      %456 = vset.pattern.permute.xlu0 3
      %457 = vperm.xlu0 %456, %v448
      %v458 = vpop.permute.xlu0 %457
      %459 = vset.pattern.permute.xlu0 3
      %460 = vperm.xlu0 %459, %v449
      %v461 = vpop.permute.xlu0 %460
      %vm462 = vcmp.eq.s32.totalorder %v452, 1
      %vm463 = vcmp.eq.s32.totalorder %v455, 1
      %vm464 = vcmp.eq.s32.totalorder %v458, 1
      %vm465 = vcmp.eq.s32.totalorder %v461, 1
      %v466 = vsel %vm462, %v303, %v340
      %v467 = vsel %vm462, %v305, %v355
      %v468 = vsel %vm463, %v307, %v370
      %v469 = vsel %vm463, %v309, %v385
      %v470 = vsel %vm464, %v311, %v400
      %v471 = vsel %vm464, %v313, %v415
      %v472 = vsel %vm465, %v315, %v430
      %v473 = vsel %vm465, %v317, %v445
      %v474 = vadd.f32 %v466, %v270
      %v475 = vadd.f32 %v467, %v271
      %v476 = vadd.f32 %v468, %v272
      %v477 = vadd.f32 %v469, %v273
      %v478 = vadd.f32 %v470, %v274
      %v479 = vadd.f32 %v471, %v275
      %v480 = vadd.f32 %v472, %v276
      %v481 = vadd.f32 %v473, %v277
      %482 = vset.pattern.permute.xlu0 0
      %483 = vperm.xlu0 %482, %v183
      %v484 = vpop.permute.xlu0 %483
      %486 = vset.pattern.permute.xlu0 0
      %487 = vperm.xlu0 %486, %v184
      %v488 = vpop.permute.xlu0 %487
      %490 = vset.pattern.permute.xlu0 0
      %491 = vperm.xlu0 %490, %v185
      %v492 = vpop.permute.xlu0 %491
      %494 = vset.pattern.permute.xlu0 0
      %495 = vperm.xlu0 %494, %v186
      %v496 = vpop.permute.xlu0 %495
      %v498 = vmul.f32 %v474, %v484
      %v499 = vmul.f32 %v475, %v484
      %v500 = vmul.f32 %v476, %v488
      %v501 = vmul.f32 %v477, %v488
      %v502 = vmul.f32 %v478, %v492
      %v503 = vmul.f32 %v479, %v492
      %v504 = vmul.f32 %v480, %v496
      %v505 = vmul.f32 %v481, %v496
      %506 = vst [vmem:[%s181] sm:$0xff] %v498
      %507 = vst [vmem:[%s181 + $0x8] sm:$0xff] %v499
      %508 = vst [vmem:[%s181 + $0x10] sm:$0xff] %v500
      %509 = vst [vmem:[%s181 + $0x18] sm:$0xff] %v501
      %510 = vst [vmem:[%s181 + $0x20] sm:$0xff] %v502
      %511 = vst [vmem:[%s181 + $0x28] sm:$0xff] %v503
      %512 = vst [vmem:[%s181 + $0x30] sm:$0x7] %v504
      %513 = vst [vmem:[%s181 + $0x38] sm:$0x7] %v505
      %s514 = smul.u32 2, %s18
      %p515 = scmp.lt.s32.totalorder %s17, 1
      %s516 = scalar_select %p515, %s17, 1
      %p517 = scmp.lt.s32.totalorder %s514, 1
      %s518 = scalar_select %p517, %s514, 1
      %s519 = smul.addr %s516, 8
      %s520 = sadd.s32 %s518, %s519
      %s521 = smul.addr %s520, 8
      %s522 = scalar_lea.vmem %s2, %s521
      // Predicated region
      $region29: #{tpu_custom_call.1} parent=27 // pred_check
        %p523 = pneg %p94
      $region30: #{tpu_custom_call.1} parent=27 // pred_check_branch
        %525 = sbr.rel (%p523) target = $region32
      $region31: #{tpu_custom_call.1} parent=27 // pred_region
        %s526 = smul.u32 2, %s18
      $region32: #{tpu_custom_call.1} parent=27 // pred_fallthru
        _
    $region28: #{tpu_custom_call.1} parent=5 // pred_fallthru
      _
    %p527 = scmp.le.s32.totalorder 2, %s8
    // Predicated region
    $region33: #{tpu_custom_call.1} parent=5 // pred_check
      %p528 = pneg %p527
    $region34: #{tpu_custom_call.1} parent=5 // pred_check_branch
      %530 = sbr.rel (%p528) target = $region36
    $region35: #{tpu_custom_call.1} parent=5 // pred_region
      %s531 = ssub.s32 %s8, 2
      // Predicated region
      $region37: #{tpu_custom_call.1} parent=35 // pred_check
        %p532 = pneg %p100
      $region38: #{tpu_custom_call.1} parent=35 // pred_check_branch
        %534 = sbr.rel (%p532) target = $region40
      $region39: #{tpu_custom_call.1} parent=35 // pred_region
        %s535 = smul.u32 2, %s20
        %p536 = scmp.lt.s32.totalorder %s19, 1
        %s537 = scalar_select %p536, %s19, 1
        %p538 = scmp.lt.s32.totalorder %s535, 1
        %s539 = scalar_select %p538, %s535, 1
        %s540 = smul.addr %s537, 8
        %s541 = sadd.s32 %s539, %s540
        %s542 = smul.addr %s541, 8
        %s543 = scalar_lea.vmem %s2, %s542
      $region40: #{tpu_custom_call.1} parent=35 // pred_fallthru
        _
    $region36: #{tpu_custom_call.1} parent=5 // pred_fallthru
      _
  $region6: #{tpu_custom_call.1} parent=0 // loop_footer
    %s12 = sadd.s32 1, %s8
  $region7: #{tpu_custom_call.1} parent=0 // loop_footer_branch
    %7 = sbr.rel target = $region3
  $region8: #{tpu_custom_call.1} parent=0 // loop_exit
    _

</llo_original>
